<compile_context>
chip_gen: v7x
topology: tpu7x:2x2x1
jax: 0.10.0
libtpu: 0.0.40
codegen_flags: <defaults>
</compile_context>

<pallas_src>
import jax
import jax.numpy as jnp
from jax.experimental import pallas as pl
from jax.experimental.pallas import tpu as pltpu


def _expand_kernel(x_ref, p_ref, q_ref, o_ref):
    # x_ref: (1, s*s, 1, H, W)   source channels for this (n, c_out)
    # p_ref: (s, H*s, H)         row-spread matrices P_a
    # q_ref: (s, W, W*s)         column-spread matrices Q_b
    # o_ref: (1, 1, H*s, W*s)
    s = p_ref.shape[0]
    H = x_ref.shape[-2]
    Hs, Ws = o_ref.shape[-2], o_ref.shape[-1]

    acc = jnp.zeros((Hs, Ws), dtype=jnp.float32)
    for a in range(s):                       # static unroll; s (gain) is tiny
        row = jnp.zeros((H, Ws), dtype=jnp.float32)
        for b in range(s):
            x_ab = x_ref[0, a * s + b, 0, :, :].astype(jnp.float32)     # (H, W)
            row = row + jnp.dot(x_ab, q_ref[b],
                                preferred_element_type=jnp.float32)     # (H, W*s)
        acc = acc + jnp.dot(p_ref[a], row,
                            preferred_element_type=jnp.float32)         # (H*s, W*s)
    o_ref[0, 0, :, :] = acc.astype(o_ref.dtype)


def expand(x, gain=2):
    """Pallas TPU implementation of Expand.forward.  x: (N, C, H, W)."""
    N, C, H, W = x.shape
    s = int(gain)
    assert C % (s * s) == 0, "C must be divisible by gain**2"
    C_out = C // (s * s)

    # Free reshape: channel index c_in = (a*s + b)*C_out + c_out.
    x5 = x.reshape(N, s * s, C_out, H, W)

    a_ids = jnp.arange(s)
    # P[a, r, h] = 1 iff r == h*s + a         -> shape (s, H*s, H)
    P = (jnp.arange(H * s)[None, :, None]
         == jnp.arange(H)[None, None, :] * s + a_ids[:, None, None]
         ).astype(jnp.float32)
    # Q[b, w, q] = 1 iff q == w*s + b         -> shape (s, W, W*s)
    Q = (jnp.arange(W * s)[None, None, :]
         == jnp.arange(W)[None, :, None] * s + a_ids[:, None, None]
         ).astype(jnp.float32)

    itemsize = jnp.dtype(x.dtype).itemsize
    cost = pl.CostEstimate(
        flops=2 * (s ** 3) * H * W * (H + W) * N * C_out,
        transcendentals=0,
        bytes_accessed=2 * N * C * H * W * itemsize + (P.size + Q.size) * 4,
    )

    out = pl.pallas_call(
        _expand_kernel,
        out_shape=jax.ShapeDtypeStruct((N, C_out, H * s, W * s), x.dtype),
        grid=(N, C_out),
        in_specs=[
            # s*s source channels of one (n, c_out); last two block dims = full (H, W).
            pl.BlockSpec((1, s * s, 1, H, W), lambda n, c: (n, 0, c, 0, 0)),
            # Grid-invariant spread matrices; constant index map -> copied once.
            pl.BlockSpec((s, H * s, H), lambda n, c: (0, 0, 0)),
            pl.BlockSpec((s, W, W * s), lambda n, c: (0, 0, 0)),
        ],
        out_specs=pl.BlockSpec((1, 1, H * s, W * s), lambda n, c: (n, c, 0, 0)),
        compiler_params=pltpu.CompilerParams(
            dimension_semantics=("parallel", "parallel")),
        cost_estimate=cost,
    )(x5, P, Q)
    return out


def _reference(x, gain=2):
    """Pure-JAX mirror of the PyTorch forward."""
    N, C, H, W = x.shape
    s = gain
    y = x.reshape(N, s, s, C // (s * s), H, W)
    y = jnp.transpose(y, (0, 3, 4, 1, 5, 2))
    return y.reshape(N, C // (s * s), H * s, W * s)


if __name__ == "__main__":
    N, C, H, W = 2, 8, 16, 16
    gain = 2

    x = jax.random.normal(jax.random.PRNGKey(0), (N, C, H, W), dtype=jnp.float32)

    out = expand(x, gain=gain)
    out = jax.block_until_ready(out)

    ref = _reference(x, gain=gain)
    assert out.shape == (N, C // gain ** 2, H * gain, W * gain)
    assert jnp.allclose(out, ref, atol=1e-6, rtol=1e-6), "mismatch vs reference"

    print("KERNEL_OK")
</pallas_src>

<mosaic_0001>
module attributes {stable_mosaic.version = 11 : i64} {
  func.func @_expand_kernel(%arg0: i32, %arg1: i32, %arg2: memref<1x4x1x16x16xf32, #tpu.memory_space<vmem>>, %arg3: memref<2x32x16xf32, #tpu.memory_space<vmem>>, %arg4: memref<2x16x32xf32, #tpu.memory_space<vmem>>, %arg5: memref<1x1x32x32xf32, #tpu.memory_space<vmem>>) attributes {dimension_semantics = [#tpu.dimension_semantics<parallel>, #tpu.dimension_semantics<parallel>], iteration_bounds = array<i64: 2, 2>, scalar_prefetch = 0 : i64, scratch_operands = 0 : i64, tpu.core_type = #tpu.core_type<tc>, window_params = [{transform_indices = @transform_0, window_bounds = array<i64: 1, 4, 1, 16, 16>}, {pipeline_mode = #tpu.pipeline_mode<synchronous>, transform_indices = @transform_1, window_bounds = array<i64: 2, 32, 16>}, {pipeline_mode = #tpu.pipeline_mode<synchronous>, transform_indices = @transform_2, window_bounds = array<i64: 2, 16, 32>}, {transform_indices = @transform_3, window_bounds = array<i64: 1, 1, 32, 32>}]} {
    %cst = arith.constant 0.000000e+00 : f32
    %0 = vector.broadcast %cst : f32 to vector<32x32xf32>
    %cst_0 = arith.constant 0.000000e+00 : f32
    %1 = vector.broadcast %cst_0 : f32 to vector<16x32xf32>
    %c0 = arith.constant 0 : index
    %c0_1 = arith.constant 0 : index
    %c0_2 = arith.constant 0 : index
    %c0_3 = arith.constant 0 : index
    %c0_4 = arith.constant 0 : index
    %2 = vector.load %arg2[%c0, %c0_1, %c0_2, %c0_3, %c0_4] : memref<1x4x1x16x16xf32, #tpu.memory_space<vmem>>, vector<1x1x1x16x16xf32>
    %3 = vector.shape_cast %2 : vector<1x1x1x16x16xf32> to vector<16x16xf32>
    %c0_5 = arith.constant 0 : index
    %c0_6 = arith.constant 0 : index
    %c0_7 = arith.constant 0 : index
    %4 = vector.load %arg4[%c0_5, %c0_6, %c0_7] : memref<2x16x32xf32, #tpu.memory_space<vmem>>, vector<1x16x32xf32>
    %5 = vector.shape_cast %4 : vector<1x16x32xf32> to vector<16x32xf32>
    %cst_8 = arith.constant dense<0.000000e+00> : vector<16x32xf32>
    %6 = tpu.matmul %3, %5, %cst_8 {dimension_numbers = #tpu.dot_dimension_numbers<[1], [0], [0], [1], [0, 0, 1, 1], [], []>} : vector<16x16xf32>, vector<16x32xf32>, vector<16x32xf32> -> vector<16x32xf32>
    %7 = arith.addf %1, %6 : vector<16x32xf32>
    %c0_9 = arith.constant 0 : index
    %c1 = arith.constant 1 : index
    %c0_10 = arith.constant 0 : index
    %c0_11 = arith.constant 0 : index
    %c0_12 = arith.constant 0 : index
    %8 = vector.load %arg2[%c0_9, %c1, %c0_10, %c0_11, %c0_12] : memref<1x4x1x16x16xf32, #tpu.memory_space<vmem>>, vector<1x1x1x16x16xf32>
    %9 = vector.shape_cast %8 : vector<1x1x1x16x16xf32> to vector<16x16xf32>
    %c1_13 = arith.constant 1 : index
    %c0_14 = arith.constant 0 : index
    %c0_15 = arith.constant 0 : index
    %10 = vector.load %arg4[%c1_13, %c0_14, %c0_15] : memref<2x16x32xf32, #tpu.memory_space<vmem>>, vector<1x16x32xf32>
    %11 = vector.shape_cast %10 : vector<1x16x32xf32> to vector<16x32xf32>
    %cst_16 = arith.constant dense<0.000000e+00> : vector<16x32xf32>
    %12 = tpu.matmul %9, %11, %cst_16 {dimension_numbers = #tpu.dot_dimension_numbers<[1], [0], [0], [1], [0, 0, 1, 1], [], []>} : vector<16x16xf32>, vector<16x32xf32>, vector<16x32xf32> -> vector<16x32xf32>
    %13 = arith.addf %7, %12 : vector<16x32xf32>
    %c0_17 = arith.constant 0 : index
    %c0_18 = arith.constant 0 : index
    %c0_19 = arith.constant 0 : index
    %14 = vector.load %arg3[%c0_17, %c0_18, %c0_19] : memref<2x32x16xf32, #tpu.memory_space<vmem>>, vector<1x32x16xf32>
    %15 = vector.shape_cast %14 : vector<1x32x16xf32> to vector<32x16xf32>
    %cst_20 = arith.constant dense<0.000000e+00> : vector<32x32xf32>
    %16 = tpu.matmul %15, %13, %cst_20 {dimension_numbers = #tpu.dot_dimension_numbers<[1], [0], [0], [1], [0, 0, 1, 1], [], []>} : vector<32x16xf32>, vector<16x32xf32>, vector<32x32xf32> -> vector<32x32xf32>
    %17 = arith.addf %0, %16 : vector<32x32xf32>
    %cst_21 = arith.constant 0.000000e+00 : f32
    %18 = vector.broadcast %cst_21 : f32 to vector<16x32xf32>
    %c0_22 = arith.constant 0 : index
    %c2 = arith.constant 2 : index
    %c0_23 = arith.constant 0 : index
    %c0_24 = arith.constant 0 : index
    %c0_25 = arith.constant 0 : index
    %19 = vector.load %arg2[%c0_22, %c2, %c0_23, %c0_24, %c0_25] : memref<1x4x1x16x16xf32, #tpu.memory_space<vmem>>, vector<1x1x1x16x16xf32>
    %20 = vector.shape_cast %19 : vector<1x1x1x16x16xf32> to vector<16x16xf32>
    %c0_26 = arith.constant 0 : index
    %c0_27 = arith.constant 0 : index
    %c0_28 = arith.constant 0 : index
    %21 = vector.load %arg4[%c0_26, %c0_27, %c0_28] : memref<2x16x32xf32, #tpu.memory_space<vmem>>, vector<1x16x32xf32>
    %22 = vector.shape_cast %21 : vector<1x16x32xf32> to vector<16x32xf32>
    %cst_29 = arith.constant dense<0.000000e+00> : vector<16x32xf32>
    %23 = tpu.matmul %20, %22, %cst_29 {dimension_numbers = #tpu.dot_dimension_numbers<[1], [0], [0], [1], [0, 0, 1, 1], [], []>} : vector<16x16xf32>, vector<16x32xf32>, vector<16x32xf32> -> vector<16x32xf32>
    %24 = arith.addf %18, %23 : vector<16x32xf32>
    %c0_30 = arith.constant 0 : index
    %c3 = arith.constant 3 : index
    %c0_31 = arith.constant 0 : index
    %c0_32 = arith.constant 0 : index
    %c0_33 = arith.constant 0 : index
    %25 = vector.load %arg2[%c0_30, %c3, %c0_31, %c0_32, %c0_33] : memref<1x4x1x16x16xf32, #tpu.memory_space<vmem>>, vector<1x1x1x16x16xf32>
    %26 = vector.shape_cast %25 : vector<1x1x1x16x16xf32> to vector<16x16xf32>
    %c1_34 = arith.constant 1 : index
    %c0_35 = arith.constant 0 : index
    %c0_36 = arith.constant 0 : index
    %27 = vector.load %arg4[%c1_34, %c0_35, %c0_36] : memref<2x16x32xf32, #tpu.memory_space<vmem>>, vector<1x16x32xf32>
    %28 = vector.shape_cast %27 : vector<1x16x32xf32> to vector<16x32xf32>
    %cst_37 = arith.constant dense<0.000000e+00> : vector<16x32xf32>
    %29 = tpu.matmul %26, %28, %cst_37 {dimension_numbers = #tpu.dot_dimension_numbers<[1], [0], [0], [1], [0, 0, 1, 1], [], []>} : vector<16x16xf32>, vector<16x32xf32>, vector<16x32xf32> -> vector<16x32xf32>
    %30 = arith.addf %24, %29 : vector<16x32xf32>
    %c1_38 = arith.constant 1 : index
    %c0_39 = arith.constant 0 : index
    %c0_40 = arith.constant 0 : index
    %31 = vector.load %arg3[%c1_38, %c0_39, %c0_40] : memref<2x32x16xf32, #tpu.memory_space<vmem>>, vector<1x32x16xf32>
    %32 = vector.shape_cast %31 : vector<1x32x16xf32> to vector<32x16xf32>
    %cst_41 = arith.constant dense<0.000000e+00> : vector<32x32xf32>
    %33 = tpu.matmul %32, %30, %cst_41 {dimension_numbers = #tpu.dot_dimension_numbers<[1], [0], [0], [1], [0, 0, 1, 1], [], []>} : vector<32x16xf32>, vector<16x32xf32>, vector<32x32xf32> -> vector<32x32xf32>
    %34 = arith.addf %17, %33 : vector<32x32xf32>
    %c0_42 = arith.constant 0 : index
    %c0_43 = arith.constant 0 : index
    %c0_44 = arith.constant 0 : index
    %c0_45 = arith.constant 0 : index
    %35 = vector.load %arg5[%c0_42, %c0_43, %c0_44, %c0_45] : memref<1x1x32x32xf32, #tpu.memory_space<vmem>>, vector<1x1x32x32xf32>
    %36 = vector.shape_cast %35 : vector<1x1x32x32xf32> to vector<32x32xf32>
    %37 = vector.shape_cast %34 : vector<32x32xf32> to vector<1x1x32x32xf32>
    tpu.vector_store %arg5[%c0_42, %c0_43, %c0_44, %c0_45], %37 {strides = array<i32>} : memref<1x1x32x32xf32, #tpu.memory_space<vmem>>, vector<1x1x32x32xf32>,
    return
  }
  func.func @transform_0(%arg0: i32, %arg1: i32) -> (i32, i32, i32, i32, i32) {
    %c0_i32 = arith.constant 0 : i32
    %c0_i32_0 = arith.constant 0 : i32
    %c0_i32_1 = arith.constant 0 : i32
    %c0_i32_2 = arith.constant 0 : i32
    return %arg0, %c0_i32, %arg1, %c0_i32_0, %c0_i32_1 : i32, i32, i32, i32, i32
  }
  func.func @transform_1(%arg0: i32, %arg1: i32) -> (i32, i32, i32) {
    %c0_i32 = arith.constant 0 : i32
    %c0_i32_0 = arith.constant 0 : i32
    %c0_i32_1 = arith.constant 0 : i32
    %c0_i32_2 = arith.constant 0 : i32
    return %c0_i32, %c0_i32_0, %c0_i32_1 : i32, i32, i32
  }
  func.func @transform_2(%arg0: i32, %arg1: i32) -> (i32, i32, i32) {
    %c0_i32 = arith.constant 0 : i32
    %c0_i32_0 = arith.constant 0 : i32
    %c0_i32_1 = arith.constant 0 : i32
    %c0_i32_2 = arith.constant 0 : i32
    return %c0_i32, %c0_i32_0, %c0_i32_1 : i32, i32, i32
  }
  func.func @transform_3(%arg0: i32, %arg1: i32) -> (i32, i32, i32, i32) {
    %c0_i32 = arith.constant 0 : i32
    %c0_i32_0 = arith.constant 0 : i32
    %c0_i32_1 = arith.constant 0 : i32
    return %arg0, %arg1, %c0_i32, %c0_i32_0 : i32, i32, i32, i32
  }
}

</mosaic_0001>

<llo_original>
// kernel: tpu_custom_call.1
$region0: #{tpu_custom_call.1}
  #allocation0 [shape = 'u32[]', space=smem, size = 0x4, offset = 0x4, fixed_abs, tag = 'smem constant byte address 0x4 - core index']
  #allocation1 [shape = 'u32[144,128]{1,0:T(1,128)}', space=vmem, size = 0x12000, scoped, tag = 'internal scratch']
  #allocation6 [shape = 's32[]', space=sflag, size = 0x4, offset = 0, fixed_abs, tag = 'sflag constant byte address 0x0 - dummy sync flag']
  %s0 = inlined_call_operand.hbm [shape: f32[2,4,2,16,16], index: 0, kind: input, shape index: {}]
  %s1 = inlined_call_operand.vmem [shape: f32[2,32,16], index: 1, kind: input, shape index: {}]
  %s2 = inlined_call_operand.vmem [shape: f32[2,16,32], index: 2, kind: input, shape index: {}]
  %s3 = inlined_call_operand.hbm [shape: f32[2,2,32,32], index: 3, kind: output, shape index: {}]
  %s4 = sld [smem:[#allocation0]]
  $region49: #{tpu_custom_call.1} parent=0
    _
  %s6 = ssub.s32 1, %s4
  %s7 = scalar_select 0, %s6, %s4
  $region1: #{tpu_custom_call.1} parent=0
    #allocation2 [shape = 'u8[65536]{0}', space=vmem, size = 0x10000, scoped, tag = 'input window, operand 0']
    #allocation3 [shape = 's32[2]{0}', space=sflag, size = 0x8, scoped, tag = 'scoped memory for tpu_custom_call.1']
    #allocation4 [shape = 's32[2]{0}', space=sflag, size = 0x8, scoped, tag = 'scoped memory for tpu_custom_call.1']
    #allocation5 [shape = 'u8[32768]{0}', space=vmem, size = 0x8000, scoped, tag = 'output window, operand 0']
    %8 = vsyncpa [#allocation3], 0
    %s9 = scalar_lea.sflag [#allocation3], 1
    %10 = vsyncpa %s9, 0
    %11 = vsyncpa [#allocation4], 0
    %s12 = scalar_lea.sflag [#allocation4], 1
    %13 = vsyncpa %s12, 0
    loop: start=0, step=1, limit=6
    $region2: #{tpu_custom_call.1} parent=1 // loop_pre_header
      _
    $region3: #{tpu_custom_call.1} parent=1 // loop_header
      %s15 = sphi 0, %s19
      %p16 = scmp.ge.s32.totalorder %s15, 6
      %s22 = sphi 0, %s34
      %s23 = sphi 0, %s30
      %s24 = sphi 0, %s22
      %s25 = sphi 0, %s23
      %s26 = sphi 0, %s24
      %s27 = sphi 0, %s25
      %s39 = sphi 0, %s41
      %s42 = sphi 0, %s39
      %s43 = sphi 0, %s42
      %s59 = sphi 0, %s43
      %s63 = sphi 0, %s63
      %s65 = sphi 0, %s63
      %s66 = sphi 0, %s65
      %s80 = sphi 0, %s66
      %s84 = sphi 0, %s84
      %s86 = sphi 0, %s84
      %s87 = sphi 0, %s86
      %s101 = sphi 0, %s87
      %s109 = sphi 0, %s111
      %s112 = sphi 0, %s109
      %s113 = sphi 0, %s112
      %s129 = sphi 0, %s113
    $region4: #{tpu_custom_call.1} parent=1 // loop_header_branch
      %18 = sbr.rel (%p16) target = $region8
    $region5: #{tpu_custom_call.1} parent=1 // loop_body
      %s20 = ssub.s32 %s15, 1
      %s21 = ssub.s32 %s15, 2
      %s28 = sadd.s32 1, %s23
      %p29 = scmp.ge.s32.totalorder %s28, 2
      %s30 = scalar_select %p29, 0, %s28
      %s31 = sadd.s32 1, %s22
      %s32 = scalar_select %p29, %s31, %s22
      %p33 = scmp.ge.s32.totalorder %s32, 2
      %s34 = scalar_select %p33, 0, %s32
      %s35 = ssub.s32 %s22, %s34
      %s36 = ssub.s32 %s23, %s30
      %s37 = sor.u32 %s35, %s36
      %p38 = scmp.eq.s32.totalorder %s37, 0
      %s40 = sadd.s32 %s39, 1
      %s41 = scalar_select %p38, %s39, %s40
      %p44 = pneg %p38
      %p45 = scmp.eq.s32.totalorder %s15, 3
      %p46 = por %p44, %p45
      %p47 = scmp.ne.s32.totalorder %s39, %s42
      %p48 = scmp.eq.s32.totalorder %s15, 0
      %p49 = por %p47, %p48
      %p50 = scmp.ne.s32.totalorder %s39, %s42
      %p51 = scmp.eq.s32.totalorder %s20, 3
      %p52 = por %p50, %p51
      %p53 = scmp.ne.s32.totalorder %s42, %s43
      %p54 = scmp.eq.s32.totalorder %s20, 0
      %p55 = por %p53, %p54
      %p56 = scmp.ne.s32.totalorder %s42, %s43
      %p57 = scmp.eq.s32.totalorder %s21, 3
      %p58 = por %p56, %p57
      %p60 = scmp.ne.s32.totalorder %s43, %s59
      %p61 = scmp.eq.s32.totalorder %s21, 0
      %p62 = por %p60, %p61
      %s64 = sadd.s32 %s63, 1
      %p67 = scmp.eq.s32.totalorder %s15, 3
      %p68 = scmp.ne.s32.totalorder %s63, %s65
      %p69 = scmp.eq.s32.totalorder %s15, 0
      %p70 = por %p68, %p69
      %p71 = scmp.ne.s32.totalorder %s63, %s65
      %p72 = scmp.eq.s32.totalorder %s20, 3
      %p73 = por %p71, %p72
      %p74 = scmp.ne.s32.totalorder %s65, %s66
      %p75 = scmp.eq.s32.totalorder %s20, 0
      %p76 = por %p74, %p75
      %p77 = scmp.ne.s32.totalorder %s65, %s66
      %p78 = scmp.eq.s32.totalorder %s21, 3
      %p79 = por %p77, %p78
      %p81 = scmp.ne.s32.totalorder %s66, %s80
      %p82 = scmp.eq.s32.totalorder %s21, 0
      %p83 = por %p81, %p82
      %s85 = sadd.s32 %s84, 1
      %p88 = scmp.eq.s32.totalorder %s15, 3
      %p89 = scmp.ne.s32.totalorder %s84, %s86
      %p90 = scmp.eq.s32.totalorder %s15, 0
      %p91 = por %p89, %p90
      %p92 = scmp.ne.s32.totalorder %s84, %s86
      %p93 = scmp.eq.s32.totalorder %s20, 3
      %p94 = por %p92, %p93
      %p95 = scmp.ne.s32.totalorder %s86, %s87
      %p96 = scmp.eq.s32.totalorder %s20, 0
      %p97 = por %p95, %p96
      %p98 = scmp.ne.s32.totalorder %s86, %s87
      %p99 = scmp.eq.s32.totalorder %s21, 3
      %p100 = por %p98, %p99
      %p102 = scmp.ne.s32.totalorder %s87, %s101
      %p103 = scmp.eq.s32.totalorder %s21, 0
      %p104 = por %p102, %p103
      %s105 = ssub.s32 %s22, %s34
      %s106 = ssub.s32 %s23, %s30
      %s107 = sor.u32 %s105, %s106
      %p108 = scmp.eq.s32.totalorder %s107, 0
      %s110 = sadd.s32 %s109, 1
      %s111 = scalar_select %p108, %s109, %s110
      %p114 = pneg %p108
      %p115 = scmp.eq.s32.totalorder %s15, 3
      %p116 = por %p114, %p115
      %p117 = scmp.ne.s32.totalorder %s109, %s112
      %p118 = scmp.eq.s32.totalorder %s15, 0
      %p119 = por %p117, %p118
      %p120 = scmp.ne.s32.totalorder %s109, %s112
      %p121 = scmp.eq.s32.totalorder %s20, 3
      %p122 = por %p120, %p121
      %p123 = scmp.ne.s32.totalorder %s112, %s113
      %p124 = scmp.eq.s32.totalorder %s20, 0
      %p125 = por %p123, %p124
      %p126 = scmp.ne.s32.totalorder %s112, %s113
      %p127 = scmp.eq.s32.totalorder %s21, 3
      %p128 = por %p126, %p127
      %p130 = scmp.ne.s32.totalorder %s113, %s129
      %p131 = scmp.eq.s32.totalorder %s21, 0
      %p132 = por %p130, %p131
      %p133 = scmp.le.s32.totalorder 1, %s15
      %p134 = scmp.lt.s32.totalorder %s15, 5
      %p135 = pnand %p133, %p134
      %p136 = pneg %p135
      // Predicated region
      $region9: #{tpu_custom_call.1} parent=5 // pred_check
        _
      $region10: #{tpu_custom_call.1} parent=5 // pred_check_branch
        %138 = sbr.rel (%p135) target = $region12
      $region11: #{tpu_custom_call.1} parent=5 // pred_region
        %s139 = ssub.s32 %s15, 1
        // Predicated region
        $region13: #{tpu_custom_call.1} parent=11 // pred_check
          %p140 = pneg %p76
        $region14: #{tpu_custom_call.1} parent=11 // pred_check_branch
          %142 = sbr.rel (%p140) target = $region16
        $region15: #{tpu_custom_call.1} parent=11 // pred_region
          _
        $region16: #{tpu_custom_call.1} parent=11 // pred_fallthru
          _
        // Predicated region
        $region17: #{tpu_custom_call.1} parent=11 // pred_check
          %p143 = pneg %p97
        $region18: #{tpu_custom_call.1} parent=11 // pred_check_branch
          %145 = sbr.rel (%p143) target = $region20
        $region19: #{tpu_custom_call.1} parent=11 // pred_region
          _
        $region20: #{tpu_custom_call.1} parent=11 // pred_fallthru
          _
      $region12: #{tpu_custom_call.1} parent=5 // pred_fallthru
        _
      %p146 = scmp.lt.s32.totalorder %s15, 4
      // Predicated region
      $region21: #{tpu_custom_call.1} parent=5 // pred_check
        %p147 = pneg %p146
      $region22: #{tpu_custom_call.1} parent=5 // pred_check_branch
        %149 = sbr.rel (%p147) target = $region24
      $region23: #{tpu_custom_call.1} parent=5 // pred_region
        // Predicated region
        $region25: #{tpu_custom_call.1} parent=23 // pred_check
          %p150 = pneg %p49
        $region26: #{tpu_custom_call.1} parent=23 // pred_check_branch
          %152 = sbr.rel (%p150) target = $region28
        $region27: #{tpu_custom_call.1} parent=23 // pred_region
          #allocation7 [shape = 'u32[6]{0}', space=smem, size = 0x18, scoped, tag = 'DMA stride descriptor']
          %s153 = sand.u32 %s39, 1
          %s154 = scalar_lea.sflag [#allocation3], %s153
          %s155 = sand.u32 %s39, 1
          %s156 = smul.addr %s155, 64
          %s157 = scalar_lea.vmem [#allocation2], %s156
          %s159 = ssub.s32 1024, 1024
          %160 = vsyncadd %s154, %s159
          %s161 = smul.addr %s23, 2
          %s162 = smul.addr %s22, 16
          %s163 = sadd.s32 %s161, %s162
          %s164 = smul.addr %s163, 128
          %s165 = scalar_lea.hbm %s0, %s164
          %s167 = sshll.u32 1, 14
          %s168 = sxor.u32 4294967295, %s167
          %s170 = sld [smem:[#allocation0]]
          %s171 = sadd.s32 2, %s170
          %s173 = sshll.u32 7, 26
          %s174 = sxor.u32 4294967295, %s173
          %s175 = sand.u32 0, %s174
          %s176 = sshll.u32 %s171, 26
          %s177 = sor.u32 %s175, %s176
          %s178 = sshll.u32 %s157, 4
          %s179 = int_to_ptr.vmem [resolvable:$true] %s178
          %185 = sst [smem:[#allocation7]] 512
          %s186 = scalar_lea.smem [#allocation7], 1
          %187 = sst [smem:[%s186]] 256
          %s188 = scalar_lea.smem [#allocation7], 2
          %189 = sst [smem:[%s188]] 2
          %s190 = scalar_lea.smem [#allocation7], 3
          %191 = sst [smem:[%s190]] 128
          %s192 = scalar_lea.smem [#allocation7], 4
          %193 = sst [smem:[%s192]] 128
          %s194 = scalar_lea.smem [#allocation7], 5
          %195 = sst [smem:[%s194]] 8
          %197 = dma.general %s165, 1024, %s179, %s154, [#allocation6], [#allocation7], %s177, 0
        $region28: #{tpu_custom_call.1} parent=23 // pred_fallthru
          _
      $region24: #{tpu_custom_call.1} parent=5 // pred_fallthru
        _
      %p198 = scmp.le.s32.totalorder 1, %s15
      %p199 = scmp.lt.s32.totalorder %s15, 5
      %p200 = pnand %p198, %p199
      %p201 = pneg %p200
      // Predicated region
      $region29: #{tpu_custom_call.1} parent=5 // pred_check
        _
      $region30: #{tpu_custom_call.1} parent=5 // pred_check_branch
        %203 = sbr.rel (%p200) target = $region32
      $region31: #{tpu_custom_call.1} parent=5 // pred_region
        %s204 = ssub.s32 %s15, 1
        %s205 = sand.u32 %s42, 1
        %s206 = scalar_lea.sflag [#allocation3], %s205
        %s207 = sand.u32 %s42, 1
        %s208 = smul.addr %s207, 64
        %s209 = scalar_lea.vmem [#allocation2], %s208
        // Predicated region
        $region33: #{tpu_custom_call.1} parent=31 // pred_check
          %p210 = pneg %p55
        $region34: #{tpu_custom_call.1} parent=31 // pred_check_branch
          %212 = sbr.rel (%p210) target = $region36
        $region35: #{tpu_custom_call.1} parent=31 // pred_region
          %213 = dma.done %s206, 1024
        $region36: #{tpu_custom_call.1} parent=31 // pred_fallthru
          _
        %s214 = sand.u32 %s42, 1
        %s215 = scalar_lea.sflag [#allocation3], %s214
        %s216 = sand.u32 %s42, 1
        %s217 = smul.addr %s216, 64
        %s218 = scalar_lea.vmem [#allocation2], %s217
        %p219 = pneg %p55
        %p220 = pneg %p52
        %p221 = pneg %p76
        %p222 = pneg %p73
        %p223 = pneg %p97
        %p224 = pneg %p94
        %p225 = pneg %p125
        %p226 = pneg %p122
        %s227 = sand.u32 %s112, 1
        %s228 = scalar_lea.sflag [#allocation4], %s227
        %s229 = sand.u32 %s112, 1
        %s230 = smul.addr %s229, 32
        %s231 = scalar_lea.vmem [#allocation5], %s230
        %v232 = vld [vmem:[%s209] sm:$0xff]
        %v233 = vld [vmem:[%s209 + $0x8] sm:$0xff]
        %v234 = vld [vmem:[%s2] sm:$0xff]
        %v235 = vld [vmem:[%s2 + $0x8] sm:$0xff]
        %s236 = scalar_lea.vmem %s209, 16 [#allocation2]
        %v237 = vld [vmem:[%s236] sm:$0xff]
        %v238 = vld [vmem:[%s236 + $0x8] sm:$0xff]
        %s239 = scalar_lea.vmem %s2, 16
        %v240 = vld [vmem:[%s239] sm:$0xff]
        %v241 = vld [vmem:[%s239 + $0x8] sm:$0xff]
        %vm242 = vcmask 130048
        %v244 = vsel %vm242, %v237, 0
        %v247 = vsel %vm242, %v238, 0
        %249 = vmatprep.subr.mxu0 0.0
        %250 = vmatpush1.msra.mxu0 %v240
        %251 = vmatprep.subr.mxu0 0.0
        %252 = vmatpush1.msra.mxu0 %v241
        %253 = vmatprep.subr.mxu0 0.0
        %254 = vmatpush1.msra.mxu0 0.0
        %255 = vmatprep.subr.mxu0 0.0
        %256 = vmatpush1.msra.mxu0 0.0
        %257 = vmatprep.subr.mxu0 0.0
        %258 = vmatpush1.msra.mxu0 0.0
        %259 = vmatprep.subr.mxu0 0.0
        %260 = vmatpush1.msra.mxu0 0.0
        %261 = vmatprep.subr.mxu0 0.0
        %262 = vmatpush1.msra.mxu0 0.0
        %263 = vmatprep.subr.mxu0 0.0
        %264 = vmatpush1.msra.mxu0 0.0
        %265 = vmatprep.subr.mxu0 0.0
        %266 = vmatpush1.msra.mxu0 0.0
        %267 = vmatprep.subr.mxu0 0.0
        %268 = vmatpush1.msra.mxu0 0.0
        %269 = vmatprep.subr.mxu0 0.0
        %270 = vmatpush1.msra.mxu0 0.0
        %271 = vmatprep.subr.mxu0 0.0
        %272 = vmatpush1.msra.mxu0 0.0
        %273 = vmatprep.subr.mxu0 0.0
        %274 = vmatpush1.msra.mxu0 0.0
        %275 = vmatprep.subr.mxu0 0.0
        %276 = vmatpush1.msra.mxu0 0.0
        %277 = vmatprep.subr.mxu0 0.0
        %278 = vmatpush1.msra.mxu0 0.0
        %279 = vmatprep.subr.mxu0 0.0
        %280 = vmatpush1.msra.mxu0 0.0
        %281 = vmatprep.subr.mxu0 0.0
        %282 = vmatpush1.msra.mxu0 0.0
        %283 = vmatprep.subr.mxu0 0.0
        %284 = vmatpush1.msra.mxu0 0.0
        %285 = vmatprep.subr.mxu0 0.0
        %286 = vmatpush1.msra.mxu0 0.0
        %287 = vmatprep.subr.mxu0 0.0
        %288 = vmatpush1.msra.mxu0 0.0
        %289 = vmatprep.subr.mxu0 0.0
        %290 = vmatpush1.msra.mxu0 0.0
        %291 = vmatprep.subr.mxu0 0.0
        %292 = vmatpush1.msra.mxu0 0.0
        %293 = vmatprep.subr.mxu0 0.0
        %294 = vmatpush1.msra.mxu0 0.0
        %295 = vmatprep.subr.mxu0 0.0
        %296 = vmatpush1.msra.mxu0 0.0
        %297 = vmatprep.subr.mxu0 0.0
        %298 = vmatpush1.msra.mxu0 0.0
        %299 = vmatprep.subr.mxu0 0.0
        %300 = vmatpush1.msra.mxu0 0.0
        %301 = vmatprep.subr.mxu0 0.0
        %302 = vmatpush1.msra.mxu0 0.0
        %303 = vmatprep.subr.mxu0 0.0
        %304 = vmatpush1.msra.mxu0 0.0
        %305 = vmatprep.subr.mxu0 0.0
        %306 = vmatpush1.msra.mxu0 0.0
        %307 = vmatprep.subr.mxu0 0.0
        %308 = vmatpush1.msra.mxu0 0.0
        %309 = vmatprep.subr.mxu0 0.0
        %310 = vmatpush1.msra.mxu0 0.0
        %311 = vmatprep.subr.mxu0 0.0
        %312 = vmatpush1.msra.mxu0 0.0
        %313 = vmatprep.mubr.f32.mxu0 0.0
        %314 = vmatmul.mubr.f32.gmra.mrb[0].mxu0 %v244
        %v315 = vpop.f32.mrb[0].mxu0
        %v316 = vadd.f32 0.0, %v315
        %v317 = vpop.f32.mrb[0].mxu0
        %318 = vmatprep.mubr.f32.mxu0 0.0
        %319 = vmatmul.mubr.f32.gmra.mrb[0].mxu0 %v247
        %v320 = vpop.f32.mrb[0].mxu0
        %v321 = vadd.f32 0.0, %v320
        %v322 = vpop.f32.mrb[0].mxu0
        %323 = vdwg.mxu0
        %v325 = vsel %vm242, %v232, 0
        %v328 = vsel %vm242, %v233, 0
        %330 = vmatprep.subr.mxu0 0.0
        %331 = vmatpush1.msra.mxu0 %v234
        %332 = vmatprep.subr.mxu0 0.0
        %333 = vmatpush1.msra.mxu0 %v235
        %334 = vmatprep.subr.mxu0 0.0
        %335 = vmatpush1.msra.mxu0 0.0
        %336 = vmatprep.subr.mxu0 0.0
        %337 = vmatpush1.msra.mxu0 0.0
        %338 = vmatprep.subr.mxu0 0.0
        %339 = vmatpush1.msra.mxu0 0.0
        %340 = vmatprep.subr.mxu0 0.0
        %341 = vmatpush1.msra.mxu0 0.0
        %342 = vmatprep.subr.mxu0 0.0
        %343 = vmatpush1.msra.mxu0 0.0
        %344 = vmatprep.subr.mxu0 0.0
        %345 = vmatpush1.msra.mxu0 0.0
        %346 = vmatprep.subr.mxu0 0.0
        %347 = vmatpush1.msra.mxu0 0.0
        %348 = vmatprep.subr.mxu0 0.0
        %349 = vmatpush1.msra.mxu0 0.0
        %350 = vmatprep.subr.mxu0 0.0
        %351 = vmatpush1.msra.mxu0 0.0
        %352 = vmatprep.subr.mxu0 0.0
        %353 = vmatpush1.msra.mxu0 0.0
        %354 = vmatprep.subr.mxu0 0.0
        %355 = vmatpush1.msra.mxu0 0.0
        %356 = vmatprep.subr.mxu0 0.0
        %357 = vmatpush1.msra.mxu0 0.0
        %358 = vmatprep.subr.mxu0 0.0
        %359 = vmatpush1.msra.mxu0 0.0
        %360 = vmatprep.subr.mxu0 0.0
        %361 = vmatpush1.msra.mxu0 0.0
        %362 = vmatprep.subr.mxu0 0.0
        %363 = vmatpush1.msra.mxu0 0.0
        %364 = vmatprep.subr.mxu0 0.0
        %365 = vmatpush1.msra.mxu0 0.0
        %366 = vmatprep.subr.mxu0 0.0
        %367 = vmatpush1.msra.mxu0 0.0
        %368 = vmatprep.subr.mxu0 0.0
        %369 = vmatpush1.msra.mxu0 0.0
        %370 = vmatprep.subr.mxu0 0.0
        %371 = vmatpush1.msra.mxu0 0.0
        %372 = vmatprep.subr.mxu0 0.0
        %373 = vmatpush1.msra.mxu0 0.0
        %374 = vmatprep.subr.mxu0 0.0
        %375 = vmatpush1.msra.mxu0 0.0
        %376 = vmatprep.subr.mxu0 0.0
        %377 = vmatpush1.msra.mxu0 0.0
        %378 = vmatprep.subr.mxu0 0.0
        %379 = vmatpush1.msra.mxu0 0.0
        %380 = vmatprep.subr.mxu0 0.0
        %381 = vmatpush1.msra.mxu0 0.0
        %382 = vmatprep.subr.mxu0 0.0
        %383 = vmatpush1.msra.mxu0 0.0
        %384 = vmatprep.subr.mxu0 0.0
        %385 = vmatpush1.msra.mxu0 0.0
        %386 = vmatprep.subr.mxu0 0.0
        %387 = vmatpush1.msra.mxu0 0.0
        %388 = vmatprep.subr.mxu0 0.0
        %389 = vmatpush1.msra.mxu0 0.0
        %390 = vmatprep.subr.mxu0 0.0
        %391 = vmatpush1.msra.mxu0 0.0
        %392 = vmatprep.subr.mxu0 0.0
        %393 = vmatpush1.msra.mxu0 0.0
        %394 = vmatprep.mubr.f32.mxu0 0.0
        %395 = vmatmul.mubr.f32.gmra.mrb[0].mxu0 %v325
        %v396 = vpop.f32.mrb[0].mxu0
        %v397 = vadd.f32 %v316, %v396
        %v398 = vpop.f32.mrb[0].mxu0
        %399 = vmatprep.mubr.f32.mxu0 0.0
        %400 = vmatmul.mubr.f32.gmra.mrb[0].mxu0 %v328
        %v401 = vpop.f32.mrb[0].mxu0
        %v402 = vadd.f32 %v321, %v401
        %v403 = vpop.f32.mrb[0].mxu0
        %404 = vdwg.mxu0
        %v405 = vld [vmem:[%s1] sm:$0xff]
        %v406 = vld [vmem:[%s1 + $0x8] sm:$0xff]
        %v407 = vld [vmem:[%s1 + $0x10] sm:$0xff]
        %v408 = vld [vmem:[%s1 + $0x18] sm:$0xff]
        %s409 = scalar_lea.vmem %s209, 32 [#allocation2]
        %v410 = vld [vmem:[%s409] sm:$0xff]
        %v411 = vld [vmem:[%s409 + $0x8] sm:$0xff]
        %s412 = scalar_lea.vmem %s209, 48 [#allocation2]
        %v413 = vld [vmem:[%s412] sm:$0xff]
        %v414 = vld [vmem:[%s412 + $0x8] sm:$0xff]
        %v416 = vsel %vm242, %v413, 0
        %v419 = vsel %vm242, %v414, 0
        %421 = vmatprep.subr.mxu0 0.0
        %422 = vmatpush1.msra.mxu0 %v240
        %423 = vmatprep.subr.mxu0 0.0
        %424 = vmatpush1.msra.mxu0 %v241
        %425 = vmatprep.subr.mxu0 0.0
        %426 = vmatpush1.msra.mxu0 0.0
        %427 = vmatprep.subr.mxu0 0.0
        %428 = vmatpush1.msra.mxu0 0.0
        %429 = vmatprep.subr.mxu0 0.0
        %430 = vmatpush1.msra.mxu0 0.0
        %431 = vmatprep.subr.mxu0 0.0
        %432 = vmatpush1.msra.mxu0 0.0
        %433 = vmatprep.subr.mxu0 0.0
        %434 = vmatpush1.msra.mxu0 0.0
        %435 = vmatprep.subr.mxu0 0.0
        %436 = vmatpush1.msra.mxu0 0.0
        %437 = vmatprep.subr.mxu0 0.0
        %438 = vmatpush1.msra.mxu0 0.0
        %439 = vmatprep.subr.mxu0 0.0
        %440 = vmatpush1.msra.mxu0 0.0
        %441 = vmatprep.subr.mxu0 0.0
        %442 = vmatpush1.msra.mxu0 0.0
        %443 = vmatprep.subr.mxu0 0.0
        %444 = vmatpush1.msra.mxu0 0.0
        %445 = vmatprep.subr.mxu0 0.0
        %446 = vmatpush1.msra.mxu0 0.0
        %447 = vmatprep.subr.mxu0 0.0
        %448 = vmatpush1.msra.mxu0 0.0
        %449 = vmatprep.subr.mxu0 0.0
        %450 = vmatpush1.msra.mxu0 0.0
        %451 = vmatprep.subr.mxu0 0.0
        %452 = vmatpush1.msra.mxu0 0.0
        %453 = vmatprep.subr.mxu0 0.0
        %454 = vmatpush1.msra.mxu0 0.0
        %455 = vmatprep.subr.mxu0 0.0
        %456 = vmatpush1.msra.mxu0 0.0
        %457 = vmatprep.subr.mxu0 0.0
        %458 = vmatpush1.msra.mxu0 0.0
        %459 = vmatprep.subr.mxu0 0.0
        %460 = vmatpush1.msra.mxu0 0.0
        %461 = vmatprep.subr.mxu0 0.0
        %462 = vmatpush1.msra.mxu0 0.0
        %463 = vmatprep.subr.mxu0 0.0
        %464 = vmatpush1.msra.mxu0 0.0
        %465 = vmatprep.subr.mxu0 0.0
        %466 = vmatpush1.msra.mxu0 0.0
        %467 = vmatprep.subr.mxu0 0.0
        %468 = vmatpush1.msra.mxu0 0.0
        %469 = vmatprep.subr.mxu0 0.0
        %470 = vmatpush1.msra.mxu0 0.0
        %471 = vmatprep.subr.mxu0 0.0
        %472 = vmatpush1.msra.mxu0 0.0
        %473 = vmatprep.subr.mxu0 0.0
        %474 = vmatpush1.msra.mxu0 0.0
        %475 = vmatprep.subr.mxu0 0.0
        %476 = vmatpush1.msra.mxu0 0.0
        %477 = vmatprep.subr.mxu0 0.0
        %478 = vmatpush1.msra.mxu0 0.0
        %479 = vmatprep.subr.mxu0 0.0
        %480 = vmatpush1.msra.mxu0 0.0
        %481 = vmatprep.subr.mxu0 0.0
        %482 = vmatpush1.msra.mxu0 0.0
        %483 = vmatprep.subr.mxu0 0.0
        %484 = vmatpush1.msra.mxu0 0.0
        %485 = vmatprep.mubr.f32.mxu0 0.0
        %486 = vmatmul.mubr.f32.gmra.mrb[0].mxu0 %v416
        %v487 = vpop.f32.mrb[0].mxu0
        %v488 = vadd.f32 0.0, %v487
        %v489 = vpop.f32.mrb[0].mxu0
        %490 = vmatprep.mubr.f32.mxu0 0.0
        %491 = vmatmul.mubr.f32.gmra.mrb[0].mxu0 %v419
        %v492 = vpop.f32.mrb[0].mxu0
        %v493 = vadd.f32 0.0, %v492
        %v494 = vpop.f32.mrb[0].mxu0
        %495 = vdwg.mxu0
        %v497 = vsel %vm242, %v410, 0
        %v500 = vsel %vm242, %v411, 0
        %502 = vmatprep.subr.mxu0 0.0
        %503 = vmatpush1.msra.mxu0 %v234
        %504 = vmatprep.subr.mxu0 0.0
        %505 = vmatpush1.msra.mxu0 %v235
        %506 = vmatprep.subr.mxu0 0.0
        %507 = vmatpush1.msra.mxu0 0.0
        %508 = vmatprep.subr.mxu0 0.0
        %509 = vmatpush1.msra.mxu0 0.0
        %510 = vmatprep.subr.mxu0 0.0
        %511 = vmatpush1.msra.mxu0 0.0
        %512 = vmatprep.subr.mxu0 0.0
        %513 = vmatpush1.msra.mxu0 0.0
        %514 = vmatprep.subr.mxu0 0.0
        %515 = vmatpush1.msra.mxu0 0.0
        %516 = vmatprep.subr.mxu0 0.0
        %517 = vmatpush1.msra.mxu0 0.0
        %518 = vmatprep.subr.mxu0 0.0
        %519 = vmatpush1.msra.mxu0 0.0
        %520 = vmatprep.subr.mxu0 0.0
        %521 = vmatpush1.msra.mxu0 0.0
        %522 = vmatprep.subr.mxu0 0.0
        %523 = vmatpush1.msra.mxu0 0.0
        %524 = vmatprep.subr.mxu0 0.0
        %525 = vmatpush1.msra.mxu0 0.0
        %526 = vmatprep.subr.mxu0 0.0
        %527 = vmatpush1.msra.mxu0 0.0
        %528 = vmatprep.subr.mxu0 0.0
        %529 = vmatpush1.msra.mxu0 0.0
        %530 = vmatprep.subr.mxu0 0.0
        %531 = vmatpush1.msra.mxu0 0.0
        %532 = vmatprep.subr.mxu0 0.0
        %533 = vmatpush1.msra.mxu0 0.0
        %534 = vmatprep.subr.mxu0 0.0
        %535 = vmatpush1.msra.mxu0 0.0
        %536 = vmatprep.subr.mxu0 0.0
        %537 = vmatpush1.msra.mxu0 0.0
        %538 = vmatprep.subr.mxu0 0.0
        %539 = vmatpush1.msra.mxu0 0.0
        %540 = vmatprep.subr.mxu0 0.0
        %541 = vmatpush1.msra.mxu0 0.0
        %542 = vmatprep.subr.mxu0 0.0
        %543 = vmatpush1.msra.mxu0 0.0
        %544 = vmatprep.subr.mxu0 0.0
        %545 = vmatpush1.msra.mxu0 0.0
        %546 = vmatprep.subr.mxu0 0.0
        %547 = vmatpush1.msra.mxu0 0.0
        %548 = vmatprep.subr.mxu0 0.0
        %549 = vmatpush1.msra.mxu0 0.0
        %550 = vmatprep.subr.mxu0 0.0
        %551 = vmatpush1.msra.mxu0 0.0
        %552 = vmatprep.subr.mxu0 0.0
        %553 = vmatpush1.msra.mxu0 0.0
        %554 = vmatprep.subr.mxu0 0.0
        %555 = vmatpush1.msra.mxu0 0.0
        %556 = vmatprep.subr.mxu0 0.0
        %557 = vmatpush1.msra.mxu0 0.0
        %558 = vmatprep.subr.mxu0 0.0
        %559 = vmatpush1.msra.mxu0 0.0
        %560 = vmatprep.subr.mxu0 0.0
        %561 = vmatpush1.msra.mxu0 0.0
        %562 = vmatprep.subr.mxu0 0.0
        %563 = vmatpush1.msra.mxu0 0.0
        %564 = vmatprep.subr.mxu0 0.0
        %565 = vmatpush1.msra.mxu0 0.0
        %566 = vmatprep.mubr.f32.mxu0 0.0
        %567 = vmatmul.mubr.f32.gmra.mrb[0].mxu0 %v497
        %v568 = vpop.f32.mrb[0].mxu0
        %v569 = vadd.f32 %v488, %v568
        %v570 = vpop.f32.mrb[0].mxu0
        %571 = vmatprep.mubr.f32.mxu0 0.0
        %572 = vmatmul.mubr.f32.gmra.mrb[0].mxu0 %v500
        %v573 = vpop.f32.mrb[0].mxu0
        %v574 = vadd.f32 %v493, %v573
        %v575 = vpop.f32.mrb[0].mxu0
        %576 = vdwg.mxu0
        %s577 = scalar_lea.vmem %s1, 32
        %v578 = vld [vmem:[%s577] sm:$0xff]
        %v579 = vld [vmem:[%s577 + $0x8] sm:$0xff]
        %v580 = vld [vmem:[%s577 + $0x10] sm:$0xff]
        %v581 = vld [vmem:[%s577 + $0x18] sm:$0xff]
        %v583 = vsel %vm242, %v578, 0
        %v586 = vsel %vm242, %v579, 0
        %v589 = vsel %vm242, %v580, 0
        %v592 = vsel %vm242, %v581, 0
        %594 = vmatprep.subr.mxu0 0.0
        %595 = vmatpush1.msra.mxu0 %v569
        %596 = vmatprep.subr.mxu0 0.0
        %597 = vmatpush1.msra.mxu0 %v574
        %598 = vmatprep.subr.mxu0 0.0
        %599 = vmatpush1.msra.mxu0 0.0
        %600 = vmatprep.subr.mxu0 0.0
        %601 = vmatpush1.msra.mxu0 0.0
        %602 = vmatprep.subr.mxu0 0.0
        %603 = vmatpush1.msra.mxu0 0.0
        %604 = vmatprep.subr.mxu0 0.0
        %605 = vmatpush1.msra.mxu0 0.0
        %606 = vmatprep.subr.mxu0 0.0
        %607 = vmatpush1.msra.mxu0 0.0
        %608 = vmatprep.subr.mxu0 0.0
        %609 = vmatpush1.msra.mxu0 0.0
        %610 = vmatprep.subr.mxu0 0.0
        %611 = vmatpush1.msra.mxu0 0.0
        %612 = vmatprep.subr.mxu0 0.0
        %613 = vmatpush1.msra.mxu0 0.0
        %614 = vmatprep.subr.mxu0 0.0
        %615 = vmatpush1.msra.mxu0 0.0
        %616 = vmatprep.subr.mxu0 0.0
        %617 = vmatpush1.msra.mxu0 0.0
        %618 = vmatprep.subr.mxu0 0.0
        %619 = vmatpush1.msra.mxu0 0.0
        %620 = vmatprep.subr.mxu0 0.0
        %621 = vmatpush1.msra.mxu0 0.0
        %622 = vmatprep.subr.mxu0 0.0
        %623 = vmatpush1.msra.mxu0 0.0
        %624 = vmatprep.subr.mxu0 0.0
        %625 = vmatpush1.msra.mxu0 0.0
        %626 = vmatprep.subr.mxu0 0.0
        %627 = vmatpush1.msra.mxu0 0.0
        %628 = vmatprep.subr.mxu0 0.0
        %629 = vmatpush1.msra.mxu0 0.0
        %630 = vmatprep.subr.mxu0 0.0
        %631 = vmatpush1.msra.mxu0 0.0
        %632 = vmatprep.subr.mxu0 0.0
        %633 = vmatpush1.msra.mxu0 0.0
        %634 = vmatprep.subr.mxu0 0.0
        %635 = vmatpush1.msra.mxu0 0.0
        %636 = vmatprep.subr.mxu0 0.0
        %637 = vmatpush1.msra.mxu0 0.0
        %638 = vmatprep.subr.mxu0 0.0
        %639 = vmatpush1.msra.mxu0 0.0
        %640 = vmatprep.subr.mxu0 0.0
        %641 = vmatpush1.msra.mxu0 0.0
        %642 = vmatprep.subr.mxu0 0.0
        %643 = vmatpush1.msra.mxu0 0.0
        %644 = vmatprep.subr.mxu0 0.0
        %645 = vmatpush1.msra.mxu0 0.0
        %646 = vmatprep.subr.mxu0 0.0
        %647 = vmatpush1.msra.mxu0 0.0
        %648 = vmatprep.subr.mxu0 0.0
        %649 = vmatpush1.msra.mxu0 0.0
        %650 = vmatprep.subr.mxu0 0.0
        %651 = vmatpush1.msra.mxu0 0.0
        %652 = vmatprep.subr.mxu0 0.0
        %653 = vmatpush1.msra.mxu0 0.0
        %654 = vmatprep.subr.mxu0 0.0
        %655 = vmatpush1.msra.mxu0 0.0
        %656 = vmatprep.subr.mxu0 0.0
        %657 = vmatpush1.msra.mxu0 0.0
        %658 = vmatprep.mubr.f32.mxu0 0.0
        %659 = vmatmul.mubr.f32.gmra.mrb[0].mxu0 %v583
        %v660 = vpop.f32.mrb[0].mxu0
        %v661 = vadd.f32 0.0, %v660
        %v662 = vpop.f32.mrb[0].mxu0
        %663 = vmatprep.mubr.f32.mxu0 0.0
        %664 = vmatmul.mubr.f32.gmra.mrb[0].mxu0 %v586
        %v665 = vpop.f32.mrb[0].mxu0
        %v666 = vadd.f32 0.0, %v665
        %v667 = vpop.f32.mrb[0].mxu0
        %668 = vmatprep.mubr.f32.mxu0 0.0
        %669 = vmatmul.mubr.f32.gmra.mrb[0].mxu0 %v589
        %v670 = vpop.f32.mrb[0].mxu0
        %v671 = vadd.f32 0.0, %v670
        %v672 = vpop.f32.mrb[0].mxu0
        %673 = vmatprep.mubr.f32.mxu0 0.0
        %674 = vmatmul.mubr.f32.gmra.mrb[0].mxu0 %v592
        %v675 = vpop.f32.mrb[0].mxu0
        %v676 = vadd.f32 0.0, %v675
        %v677 = vpop.f32.mrb[0].mxu0
        %678 = vdwg.mxu0
        %v680 = vsel %vm242, %v405, 0
        %v683 = vsel %vm242, %v406, 0
        %v686 = vsel %vm242, %v407, 0
        %v689 = vsel %vm242, %v408, 0
        %691 = vmatprep.subr.mxu0 0.0
        %692 = vmatpush1.msra.mxu0 %v397
        %693 = vmatprep.subr.mxu0 0.0
        %694 = vmatpush1.msra.mxu0 %v402
        %695 = vmatprep.subr.mxu0 0.0
        %696 = vmatpush1.msra.mxu0 0.0
        %697 = vmatprep.subr.mxu0 0.0
        %698 = vmatpush1.msra.mxu0 0.0
        %699 = vmatprep.subr.mxu0 0.0
        %700 = vmatpush1.msra.mxu0 0.0
        %701 = vmatprep.subr.mxu0 0.0
        %702 = vmatpush1.msra.mxu0 0.0
        %703 = vmatprep.subr.mxu0 0.0
        %704 = vmatpush1.msra.mxu0 0.0
        %705 = vmatprep.subr.mxu0 0.0
        %706 = vmatpush1.msra.mxu0 0.0
        %707 = vmatprep.subr.mxu0 0.0
        %708 = vmatpush1.msra.mxu0 0.0
        %709 = vmatprep.subr.mxu0 0.0
        %710 = vmatpush1.msra.mxu0 0.0
        %711 = vmatprep.subr.mxu0 0.0
        %712 = vmatpush1.msra.mxu0 0.0
        %713 = vmatprep.subr.mxu0 0.0
        %714 = vmatpush1.msra.mxu0 0.0
        %715 = vmatprep.subr.mxu0 0.0
        %716 = vmatpush1.msra.mxu0 0.0
        %717 = vmatprep.subr.mxu0 0.0
        %718 = vmatpush1.msra.mxu0 0.0
        %719 = vmatprep.subr.mxu0 0.0
        %720 = vmatpush1.msra.mxu0 0.0
        %721 = vmatprep.subr.mxu0 0.0
        %722 = vmatpush1.msra.mxu0 0.0
        %723 = vmatprep.subr.mxu0 0.0
        %724 = vmatpush1.msra.mxu0 0.0
        %725 = vmatprep.subr.mxu0 0.0
        %726 = vmatpush1.msra.mxu0 0.0
        %727 = vmatprep.subr.mxu0 0.0
        %728 = vmatpush1.msra.mxu0 0.0
        %729 = vmatprep.subr.mxu0 0.0
        %730 = vmatpush1.msra.mxu0 0.0
        %731 = vmatprep.subr.mxu0 0.0
        %732 = vmatpush1.msra.mxu0 0.0
        %733 = vmatprep.subr.mxu0 0.0
        %734 = vmatpush1.msra.mxu0 0.0
        %735 = vmatprep.subr.mxu0 0.0
        %736 = vmatpush1.msra.mxu0 0.0
        %737 = vmatprep.subr.mxu0 0.0
        %738 = vmatpush1.msra.mxu0 0.0
        %739 = vmatprep.subr.mxu0 0.0
        %740 = vmatpush1.msra.mxu0 0.0
        %741 = vmatprep.subr.mxu0 0.0
        %742 = vmatpush1.msra.mxu0 0.0
        %743 = vmatprep.subr.mxu0 0.0
        %744 = vmatpush1.msra.mxu0 0.0
        %745 = vmatprep.subr.mxu0 0.0
        %746 = vmatpush1.msra.mxu0 0.0
        %747 = vmatprep.subr.mxu0 0.0
        %748 = vmatpush1.msra.mxu0 0.0
        %749 = vmatprep.subr.mxu0 0.0
        %750 = vmatpush1.msra.mxu0 0.0
        %751 = vmatprep.subr.mxu0 0.0
        %752 = vmatpush1.msra.mxu0 0.0
        %753 = vmatprep.subr.mxu0 0.0
        %754 = vmatpush1.msra.mxu0 0.0
        %755 = vmatprep.mubr.f32.mxu0 0.0
        %756 = vmatmul.mubr.f32.gmra.mrb[0].mxu0 %v680
        %v757 = vpop.f32.mrb[0].mxu0
        %v758 = vadd.f32 %v661, %v757
        %v759 = vpop.f32.mrb[0].mxu0
        %760 = vmatprep.mubr.f32.mxu0 0.0
        %761 = vmatmul.mubr.f32.gmra.mrb[0].mxu0 %v683
        %v762 = vpop.f32.mrb[0].mxu0
        %v763 = vadd.f32 %v666, %v762
        %v764 = vpop.f32.mrb[0].mxu0
        %765 = vmatprep.mubr.f32.mxu0 0.0
        %766 = vmatmul.mubr.f32.gmra.mrb[0].mxu0 %v686
        %v767 = vpop.f32.mrb[0].mxu0
        %v768 = vadd.f32 %v671, %v767
        %v769 = vpop.f32.mrb[0].mxu0
        %770 = vmatprep.mubr.f32.mxu0 0.0
        %771 = vmatmul.mubr.f32.gmra.mrb[0].mxu0 %v689
        %v772 = vpop.f32.mrb[0].mxu0
        %v773 = vadd.f32 %v676, %v772
        %v774 = vpop.f32.mrb[0].mxu0
        %775 = vdwg.mxu0
        %vm776 = vcmask 261120
        %777 = vst.msk [vmem:[%s231] sm:$0xff] %vm776, %v758
        %778 = vst.msk [vmem:[%s231 + $0x8] sm:$0xff] %vm776, %v763
        %779 = vst.msk [vmem:[%s231 + $0x10] sm:$0xff] %vm776, %v768
        %780 = vst.msk [vmem:[%s231 + $0x18] sm:$0xff] %vm776, %v773
        %s781 = sand.u32 %s112, 1
        %s782 = scalar_lea.sflag [#allocation4], %s781
        %s783 = sand.u32 %s112, 1
        %s784 = smul.addr %s783, 32
        %s785 = scalar_lea.vmem [#allocation5], %s784
        // Predicated region
        $region37: #{tpu_custom_call.1} parent=31 // pred_check
          %p786 = pneg %p122
        $region38: #{tpu_custom_call.1} parent=31 // pred_check_branch
          %788 = sbr.rel (%p786) target = $region40
        $region39: #{tpu_custom_call.1} parent=31 // pred_region
          %s790 = ssub.s32 512, 512
          %791 = vsyncadd %s782, %s790
          %s792 = smul.addr %s25, 4
          %s793 = smul.addr %s24, 8
          %s794 = sadd.s32 %s792, %s793
          %s795 = smul.addr %s794, 128
          %s796 = scalar_lea.hbm %s3, %s795
          %s797 = sshll.u32 %s785, 4
          %s798 = int_to_ptr.vmem [resolvable:$true] %s797
          %803 = dma.vmem_to_hbm [thread:$0]  %s798, 512, %s796, %s782, 128, 128, 8
        $region40: #{tpu_custom_call.1} parent=31 // pred_fallthru
          _
      $region32: #{tpu_custom_call.1} parent=5 // pred_fallthru
        _
      %p804 = scmp.le.s32.totalorder 2, %s15
      // Predicated region
      $region41: #{tpu_custom_call.1} parent=5 // pred_check
        %p805 = pneg %p804
      $region42: #{tpu_custom_call.1} parent=5 // pred_check_branch
        %807 = sbr.rel (%p805) target = $region44
      $region43: #{tpu_custom_call.1} parent=5 // pred_region
        %s808 = ssub.s32 %s15, 2
        // Predicated region
        $region45: #{tpu_custom_call.1} parent=43 // pred_check
          %p809 = pneg %p128
        $region46: #{tpu_custom_call.1} parent=43 // pred_check_branch
          %811 = sbr.rel (%p809) target = $region48
        $region47: #{tpu_custom_call.1} parent=43 // pred_region
          %s812 = sand.u32 %s113, 1
          %s813 = scalar_lea.sflag [#allocation4], %s812
          %s814 = sand.u32 %s113, 1
          %s815 = smul.addr %s814, 32
          %s816 = scalar_lea.vmem [#allocation5], %s815
          %817 = dma.done %s813, 512
        $region48: #{tpu_custom_call.1} parent=43 // pred_fallthru
          _
      $region44: #{tpu_custom_call.1} parent=5 // pred_fallthru
        _
    $region6: #{tpu_custom_call.1} parent=1 // loop_footer
      %s19 = sadd.s32 1, %s15
    $region7: #{tpu_custom_call.1} parent=1 // loop_footer_branch
      %14 = sbr.rel target = $region3
    $region8: #{tpu_custom_call.1} parent=1 // loop_exit
      _
    %818 = vsyncpa [#allocation3], 1
    %s819 = scalar_lea.sflag [#allocation3], 1
    %820 = vsyncpa %s819, 1
    %821 = vsyncpa [#allocation4], 1
    %s822 = scalar_lea.sflag [#allocation4], 1
    %823 = vsyncpa %s822, 1

</llo_original>
